<compile_context>
chip_gen: v7x
topology: tpu7x:2x2x1
jax: 0.10.0
libtpu: 0.0.40
codegen_flags: <defaults>
</compile_context>

<pallas_src>
from functools import partial

import jax
import jax.numpy as jnp
import numpy as np
from jax import lax
from jax.experimental import pallas as pl
from jax.experimental.pallas import tpu as pltpu


def _lcl_kernel(x_ref, w_ref, b_ref, o_ref, *, ksz, fold, n_on_lanes):
    """Compute one (C_out-tile, N-tile) output block with a dense store per channel.

    F-on-lanes layout (n_on_lanes=False):
      x_ref: (C_in, S, tn, T)   stride-split right-padded input tile (T on lanes)
      w_ref: (tco, C_in*K, F)   weights (F on lanes)
      b_ref: (tco, 1, F)        bias pre-summed over C_in (f32)
      o_ref: (tco, tn, F)       block of the (C_out, N, F) output

    N-on-lanes layout (n_on_lanes=True), used when N > F (lane-dense batch axis):
      x_ref: (C_in, S, T, tn);  w_ref: (tco, F, C_in*K);  b_ref: (tco, F, 1)
      o_ref: (tco, F, tn)       block of the (C_out, F, N) output
    """
    c_in, s_split = x_ref.shape[0], x_ref.shape[1]
    tco = o_ref.shape[0]
    ck_total = c_in * ksz

    # Hoist: every (c, k) window tile is loaded (and cast to f32) exactly once per grid
    # step and reused across all tco output channels (no per-o re-DMA / re-cast / rotate).
    xw = []
    for c in range(c_in):
        for k in range(ksz):
            t0, s = k // s_split, k % s_split              # static -> contiguous slice
            if n_on_lanes:
                tile = x_ref[c, s, t0:t0 + fold, :]        # (F, tn)
            else:
                tile = x_ref[c, s, :, t0:t0 + fold]        # (tn, F)
            xw.append(tile.astype(jnp.float32))

    def compute_one(o):
        # One f32 accumulator per output channel; single dense, layout-matching store.
        w_o = w_ref[o].astype(jnp.float32)                 # (F, CK) or (CK, F)
        acc = jnp.zeros(xw[0].shape, jnp.float32)
        for idx in range(ck_total):
            wv = w_o[:, idx:idx + 1] if n_on_lanes else w_o[idx:idx + 1, :]
            acc = acc + xw[idx] * wv                       # broadcast over sublanes/lanes
        acc = acc + b_ref[o]                               # (F,1)/(1,F) bias broadcast
        o_ref[o] = acc.astype(o_ref.dtype)                 # dense (no masked relayout)

    # TODO(synk): for C_in*K >= ~32 and C_out >= ~128-256 switch this VPU MAC loop to a
    # per-F-tile lax.dot_general (MXU) of (tn, C_in*K) x (C_in*K, tco).
    if tco <= 16:
        for o in range(tco):                               # small: full unroll
            compute_one(o)
    else:
        def body(o, carry):
            compute_one(o)
            return carry
        lax.fori_loop(0, tco, body, 0, unroll=4)


def _vmem_budget():
    """Chip-scaled (double-buffered block working-set budget, vmem_limit_bytes)."""
    try:
        cap = int(pltpu.get_tpu_info().vmem_capacity_bytes)
    except Exception:
        cap = 64 * 1024 * 1024                 # conservative fallback (v7x per-TC size)
    frac = 0.55 if cap >= 96 * 1024 * 1024 else 0.45       # 128 MiB parts / 64 MiB parts
    return int(cap * frac), int(cap * 0.75)


def _divisor_tiles(n, granule):
    """Legal tile sizes of n: multiples of `granule` that divide n, plus n itself."""
    cands = {n}
    for d in range(granule, n, granule):
        if n % d == 0:
            cands.add(d)
    return sorted(cands, reverse=True)


def _plan_tiles(N, C_out, C_in, K, F, T, S, x_bytes, w_bytes, out_bytes,
                n_on_lanes, budget):
    """Pick (tn, tco). Returns ((tn, tco), fits_budget)."""
    sub_granule = max(32 // x_bytes, 32 // out_bytes)      # 8 / 16 / 32 for 4 / 2 / 1 B
    tn_granule = 128 if n_on_lanes else sub_granule        # lane dim needs 128-multiples
    tn_cands = _divisor_tiles(N, tn_granule)
    tco_cands = _divisor_tiles(C_out, 1)
    ck = C_in * K

    def block_bytes(tn, tco):                              # Pallas double-buffers blocks
        return 2 * (C_in * S * T * tn * x_bytes + tco * ck * F * w_bytes
                    + tco * F * 4 + tco * tn * F * out_bytes)

    fitting = [(tn, tco) for tn in tn_cands for tco in tco_cands
               if block_bytes(tn, tco) <= budget]
    if not fitting:
        return (min(tn_cands), min(tco_cands)), False
    # v7x megacore: when there is enough work, insist on >= 2 parallel grid blocks so
    # both TensorCores participate (a single-block grid forfeits up to 2x there).
    if N * C_out * F * ck >= (1 << 22):
        split = [p for p in fitting if (N // p[0]) * (C_out // p[1]) >= 2]
        if split:
            fitting = split
    return max(fitting, key=lambda p: (p[0] * p[1], p[0])), True


@partial(jax.jit, static_argnames=("kernel_size", "stride"))
def local_linear_forward(x, weight, bias, *, kernel_size, stride):
    """x: (N, C_in, L); weight: (C_out, C_in, F, K, 1) torch param layout;
    bias: (C_out, C_in, F, 1) or None. Returns (N, C_out, F)."""
    N, C_in, L = x.shape
    C_out = weight.shape[0]
    K, S = kernel_size, stride
    padding = K - 1
    F = (L + padding - K) // S + 1
    T = -(-(L + padding) // S)                              # ceil((L + K - 1) / S)

    budget, vmem_limit = _vmem_budget()
    x_bytes = x.dtype.itemsize
    w_bytes = weight.dtype.itemsize
    out_bytes = x.dtype.itemsize

    # Adaptive lane layout: put the larger of (F, N) on the 128-wide lane axis so vector
    # ops and the output stores are as lane-dense as possible.
    n_on_lanes = N > F
    (tn, tco), ok = _plan_tiles(N, C_out, C_in, K, F, T, S, x_bytes, w_bytes,
                                out_bytes, n_on_lanes, budget)
    if not ok:
        alt, alt_ok = _plan_tiles(N, C_out, C_in, K, F, T, S, x_bytes, w_bytes,
                                  out_bytes, not n_on_lanes, budget)
        if alt_ok:
            (tn, tco), n_on_lanes = alt, not n_on_lanes
    # TODO(synk): for very large in_features add F/T tiling with a (K-1)//S halo on T.

    # ---- prep: right-pad + stride-split (one fused pass; NO K x im2col in HBM). ----
    # x_r[c, s, ..., t] = x_pad[n, c, t*S + s]; window element k of output position f
    # lives at (s, t) = (k % S, f + k//S): a contiguous length-F slice along the t axis.
    # TODO(synk): for stride==1 the transpose could be folded into the consumer/kernel.
    x_pad = jnp.pad(x, ((0, 0), (0, 0), (0, T * S - L)))
    x4 = x_pad.reshape(N, C_in, T, S)
    w4 = weight[..., 0]                                     # (C_out, C_in, F, K)
    if bias is not None:
        # torch adds bias[o, c] per channel then sums over channels == adding sum_c bias.
        b2 = jnp.sum(bias[..., 0].astype(jnp.float32), axis=1)          # (C_out, F)
    else:
        b2 = jnp.zeros((C_out, F), jnp.float32)

    ck = C_in * K
    if n_on_lanes:
        x_r = jnp.transpose(x4, (1, 3, 2, 0))                           # (C_in, S, T, N)
        w_r = jnp.transpose(w4, (0, 2, 1, 3)).reshape(C_out, F, ck)     # (C_out, F, CK)
        b_r = b2.reshape(C_out, F, 1)
        x_spec = pl.BlockSpec((C_in, S, T, tn), lambda nb, co: (0, 0, 0, nb))
        w_spec = pl.BlockSpec((tco, F, ck), lambda nb, co: (co, 0, 0))
        b_spec = pl.BlockSpec((tco, F, 1), lambda nb, co: (co, 0, 0))
        out_spec = pl.BlockSpec((tco, F, tn), lambda nb, co: (co, 0, nb))
        out_shape = jax.ShapeDtypeStruct((C_out, F, N), x.dtype)
    else:
        x_r = jnp.transpose(x4, (1, 3, 0, 2))                           # (C_in, S, N, T)
        w_r = jnp.transpose(w4, (0, 1, 3, 2)).reshape(C_out, ck, F)     # (C_out, CK, F)
        b_r = b2.reshape(C_out, 1, F)
        x_spec = pl.BlockSpec((C_in, S, tn, T), lambda nb, co: (0, 0, nb, 0))
        w_spec = pl.BlockSpec((tco, ck, F), lambda nb, co: (co, 0, 0))
        b_spec = pl.BlockSpec((tco, 1, F), lambda nb, co: (co, 0, 0))
        out_spec = pl.BlockSpec((tco, tn, F), lambda nb, co: (co, nb, 0))
        out_shape = jax.ShapeDtypeStruct((C_out, N, F), x.dtype)

    # N tiles outermost, C_out tiles innermost: the x block index is constant along the
    # inner axis, so x is DMA'd exactly once per N tile.
    grid = (N // tn, C_out // tco)
    out = pl.pallas_call(
        partial(_lcl_kernel, ksz=K, fold=F, n_on_lanes=n_on_lanes),
        out_shape=out_shape,
        grid=grid,
        in_specs=[x_spec, w_spec, b_spec],
        out_specs=out_spec,
        compiler_params=pltpu.CompilerParams(
            dimension_semantics=("parallel", "parallel"),
            vmem_limit_bytes=vmem_limit),
    )(x_r, w_r, b_r)

    # The output is the smallest tensor: one cheap XLA transpose back to (N, C_out, F)
    # instead of per-channel sublane relayouts + masked stores inside the kernel.
    if n_on_lanes:
        return jnp.transpose(out, (2, 0, 1))
    return jnp.transpose(out, (1, 0, 2))


if __name__ == "__main__":
    def reference(x, weight, bias, kernel_size, stride):
        """Pure-JAX (f32, VPU) reference of the exact torch semantics."""
        N, C_in, L = x.shape
        K, S = kernel_size, stride
        padding = K - 1
        F = (L + padding - K) // S + 1
        x_pad = jnp.pad(x, ((0, 0), (0, 0), (0, padding)))
        idx = jnp.arange(F)[:, None] * S + jnp.arange(K)[None, :]
        x_unf = x_pad[:, :, idx]                                      # (N, C_in, F, K)
        out = jnp.sum(x_unf[:, None].astype(jnp.float32)
                      * weight[None, ..., 0].astype(jnp.float32), axis=(2, 4))
        if bias is not None:
            out = out + jnp.sum(bias[..., 0].astype(jnp.float32), axis=1)[None]
        return out

    def run_case(key, *, N, C_in, L, C_out, K, S, zero_bias=False, xavier=False):
        F = (L - 1) // S + 1
        k1, k2, k3 = jax.random.split(key, 3)
        x = jax.random.normal(k1, (N, C_in, L), jnp.float32)
        if xavier:
            bound = float(np.sqrt(6.0 / (C_in * F * K + C_out * F * K)))
            weight = jax.random.uniform(k2, (C_out, C_in, F, K, 1), jnp.float32,
                                        -bound, bound)
        else:
            weight = jax.random.normal(k2, (C_out, C_in, F, K, 1), jnp.float32) * 0.1
        if zero_bias:
            bias = jnp.zeros((C_out, C_in, F, 1), jnp.float32)
        else:
            bias = jax.random.normal(k3, (C_out, C_in, F, 1), jnp.float32) * 0.1
        out = jax.block_until_ready(
            local_linear_forward(x, weight, bias, kernel_size=K, stride=S))
        assert out.shape == (N, C_out, F), (out.shape, (N, C_out, F))
        np.testing.assert_allclose(np.asarray(out),
                                   np.asarray(reference(x, weight, bias, K, S)),
                                   rtol=1e-5, atol=1e-5)

    key = jax.random.PRNGKey(0)
    keys = jax.random.split(key, 5)
    # 1) module-like small config (xavier weights, zero bias), stride 2; F-on-lanes.
    run_case(keys[0], N=2, C_in=3, L=16, C_out=4, K=5, S=2, zero_bias=True, xavier=True)
    # 2) stride 1, multiple-of-8 batch / out_channels, non-zero bias; F-on-lanes.
    run_case(keys[1], N=8, C_in=2, L=32, C_out=8, K=3, S=1)
    # 3) large batch, tiny F: exercises the lane-dense N-on-lanes layout.
    run_case(keys[2], N=256, C_in=1, L=16, C_out=16, K=4, S=2)
    # 4) C_out large enough that the o loop takes the fori_loop path (tco > 16).
    run_case(keys[3], N=4, C_in=2, L=24, C_out=32, K=3, S=1)
    # 5) enough work that the planner forces >= 2 parallel grid blocks (megacore).
    run_case(keys[4], N=64, C_in=4, L=128, C_out=64, K=8, S=1)

    print("KERNEL_OK")
</pallas_src>

<mosaic_0001>
module attributes {stable_mosaic.version = 11 : i64} {
  func.func @_lcl_kernel(%arg0: i32, %arg1: i32, %arg2: memref<3x2x2x10xf32, #tpu.memory_space<vmem>>, %arg3: memref<4x15x8xf32, #tpu.memory_space<vmem>>, %arg4: memref<4x1x8xf32, #tpu.memory_space<vmem>>, %arg5: memref<4x2x8xf32, #tpu.memory_space<vmem>>) attributes {dimension_semantics = [#tpu.dimension_semantics<parallel>, #tpu.dimension_semantics<parallel>], iteration_bounds = array<i64: 1, 1>, scalar_prefetch = 0 : i64, scratch_operands = 0 : i64, tpu.core_type = #tpu.core_type<tc>, window_params = [{transform_indices = @transform_0, window_bounds = array<i64: 3, 2, 2, 10>}, {transform_indices = @transform_1, window_bounds = array<i64: 4, 15, 8>}, {transform_indices = @transform_2, window_bounds = array<i64: 4, 1, 8>}, {transform_indices = @transform_3, window_bounds = array<i64: 4, 2, 8>}]} {
    %c0 = arith.constant 0 : index
    %c0_0 = arith.constant 0 : index
    %c0_1 = arith.constant 0 : index
    %c0_2 = arith.constant 0 : index
    %0 = vector.load %arg2[%c0, %c0_0, %c0_1, %c0_2] : memref<3x2x2x10xf32, #tpu.memory_space<vmem>>, vector<1x1x2x8xf32>
    %1 = vector.shape_cast %0 : vector<1x1x2x8xf32> to vector<2x8xf32>
    %c0_3 = arith.constant 0 : index
    %c1 = arith.constant 1 : index
    %c0_4 = arith.constant 0 : index
    %c0_5 = arith.constant 0 : index
    %2 = vector.load %arg2[%c0_3, %c1, %c0_4, %c0_5] : memref<3x2x2x10xf32, #tpu.memory_space<vmem>>, vector<1x1x2x8xf32>
    %3 = vector.shape_cast %2 : vector<1x1x2x8xf32> to vector<2x8xf32>
    %c0_6 = arith.constant 0 : index
    %c0_7 = arith.constant 0 : index
    %c0_8 = arith.constant 0 : index
    %c1_9 = arith.constant 1 : index
    %4 = vector.load %arg2[%c0_6, %c0_7, %c0_8, %c1_9] : memref<3x2x2x10xf32, #tpu.memory_space<vmem>>, vector<1x1x2x8xf32>
    %5 = vector.shape_cast %4 : vector<1x1x2x8xf32> to vector<2x8xf32>
    %c0_10 = arith.constant 0 : index
    %c1_11 = arith.constant 1 : index
    %c0_12 = arith.constant 0 : index
    %c1_13 = arith.constant 1 : index
    %6 = vector.load %arg2[%c0_10, %c1_11, %c0_12, %c1_13] : memref<3x2x2x10xf32, #tpu.memory_space<vmem>>, vector<1x1x2x8xf32>
    %7 = vector.shape_cast %6 : vector<1x1x2x8xf32> to vector<2x8xf32>
    %c0_14 = arith.constant 0 : index
    %c0_15 = arith.constant 0 : index
    %c0_16 = arith.constant 0 : index
    %c2 = arith.constant 2 : index
    %8 = vector.load %arg2[%c0_14, %c0_15, %c0_16, %c2] : memref<3x2x2x10xf32, #tpu.memory_space<vmem>>, vector<1x1x2x8xf32>
    %9 = vector.shape_cast %8 : vector<1x1x2x8xf32> to vector<2x8xf32>
    %c1_17 = arith.constant 1 : index
    %c0_18 = arith.constant 0 : index
    %c0_19 = arith.constant 0 : index
    %c0_20 = arith.constant 0 : index
    %10 = vector.load %arg2[%c1_17, %c0_18, %c0_19, %c0_20] : memref<3x2x2x10xf32, #tpu.memory_space<vmem>>, vector<1x1x2x8xf32>
    %11 = vector.shape_cast %10 : vector<1x1x2x8xf32> to vector<2x8xf32>
    %c1_21 = arith.constant 1 : index
    %c1_22 = arith.constant 1 : index
    %c0_23 = arith.constant 0 : index
    %c0_24 = arith.constant 0 : index
    %12 = vector.load %arg2[%c1_21, %c1_22, %c0_23, %c0_24] : memref<3x2x2x10xf32, #tpu.memory_space<vmem>>, vector<1x1x2x8xf32>
    %13 = vector.shape_cast %12 : vector<1x1x2x8xf32> to vector<2x8xf32>
    %c1_25 = arith.constant 1 : index
    %c0_26 = arith.constant 0 : index
    %c0_27 = arith.constant 0 : index
    %c1_28 = arith.constant 1 : index
    %14 = vector.load %arg2[%c1_25, %c0_26, %c0_27, %c1_28] : memref<3x2x2x10xf32, #tpu.memory_space<vmem>>, vector<1x1x2x8xf32>
    %15 = vector.shape_cast %14 : vector<1x1x2x8xf32> to vector<2x8xf32>
    %c1_29 = arith.constant 1 : index
    %c1_30 = arith.constant 1 : index
    %c0_31 = arith.constant 0 : index
    %c1_32 = arith.constant 1 : index
    %16 = vector.load %arg2[%c1_29, %c1_30, %c0_31, %c1_32] : memref<3x2x2x10xf32, #tpu.memory_space<vmem>>, vector<1x1x2x8xf32>
    %17 = vector.shape_cast %16 : vector<1x1x2x8xf32> to vector<2x8xf32>
    %c1_33 = arith.constant 1 : index
    %c0_34 = arith.constant 0 : index
    %c0_35 = arith.constant 0 : index
    %c2_36 = arith.constant 2 : index
    %18 = vector.load %arg2[%c1_33, %c0_34, %c0_35, %c2_36] : memref<3x2x2x10xf32, #tpu.memory_space<vmem>>, vector<1x1x2x8xf32>
    %19 = vector.shape_cast %18 : vector<1x1x2x8xf32> to vector<2x8xf32>
    %c2_37 = arith.constant 2 : index
    %c0_38 = arith.constant 0 : index
    %c0_39 = arith.constant 0 : index
    %c0_40 = arith.constant 0 : index
    %20 = vector.load %arg2[%c2_37, %c0_38, %c0_39, %c0_40] : memref<3x2x2x10xf32, #tpu.memory_space<vmem>>, vector<1x1x2x8xf32>
    %21 = vector.shape_cast %20 : vector<1x1x2x8xf32> to vector<2x8xf32>
    %c2_41 = arith.constant 2 : index
    %c1_42 = arith.constant 1 : index
    %c0_43 = arith.constant 0 : index
    %c0_44 = arith.constant 0 : index
    %22 = vector.load %arg2[%c2_41, %c1_42, %c0_43, %c0_44] : memref<3x2x2x10xf32, #tpu.memory_space<vmem>>, vector<1x1x2x8xf32>
    %23 = vector.shape_cast %22 : vector<1x1x2x8xf32> to vector<2x8xf32>
    %c2_45 = arith.constant 2 : index
    %c0_46 = arith.constant 0 : index
    %c0_47 = arith.constant 0 : index
    %c1_48 = arith.constant 1 : index
    %24 = vector.load %arg2[%c2_45, %c0_46, %c0_47, %c1_48] : memref<3x2x2x10xf32, #tpu.memory_space<vmem>>, vector<1x1x2x8xf32>
    %25 = vector.shape_cast %24 : vector<1x1x2x8xf32> to vector<2x8xf32>
    %c2_49 = arith.constant 2 : index
    %c1_50 = arith.constant 1 : index
    %c0_51 = arith.constant 0 : index
    %c1_52 = arith.constant 1 : index
    %26 = vector.load %arg2[%c2_49, %c1_50, %c0_51, %c1_52] : memref<3x2x2x10xf32, #tpu.memory_space<vmem>>, vector<1x1x2x8xf32>
    %27 = vector.shape_cast %26 : vector<1x1x2x8xf32> to vector<2x8xf32>
    %c2_53 = arith.constant 2 : index
    %c0_54 = arith.constant 0 : index
    %c0_55 = arith.constant 0 : index
    %c2_56 = arith.constant 2 : index
    %28 = vector.load %arg2[%c2_53, %c0_54, %c0_55, %c2_56] : memref<3x2x2x10xf32, #tpu.memory_space<vmem>>, vector<1x1x2x8xf32>
    %29 = vector.shape_cast %28 : vector<1x1x2x8xf32> to vector<2x8xf32>
    %c0_57 = arith.constant 0 : index
    %c0_58 = arith.constant 0 : index
    %c0_59 = arith.constant 0 : index
    %30 = vector.load %arg3[%c0_57, %c0_58, %c0_59] : memref<4x15x8xf32, #tpu.memory_space<vmem>>, vector<1x15x8xf32>
    %31 = vector.shape_cast %30 : vector<1x15x8xf32> to vector<15x8xf32>
    %cst = arith.constant 0.000000e+00 : f32
    %32 = vector.broadcast %cst : f32 to vector<2x8xf32>
    %33 = vector.extract_strided_slice %31 {offsets = [0, 0], sizes = [1, 8], strides = [1, 1]} : vector<15x8xf32> to vector<1x8xf32>
    %34 = vector.broadcast %33 : vector<1x8xf32> to vector<2x8xf32>
    %35 = arith.mulf %1, %34 : vector<2x8xf32>
    %36 = arith.addf %32, %35 : vector<2x8xf32>
    %37 = vector.extract_strided_slice %31 {offsets = [1, 0], sizes = [1, 8], strides = [1, 1]} : vector<15x8xf32> to vector<1x8xf32>
    %38 = vector.broadcast %37 : vector<1x8xf32> to vector<2x8xf32>
    %39 = arith.mulf %3, %38 : vector<2x8xf32>
    %40 = arith.addf %36, %39 : vector<2x8xf32>
    %41 = vector.extract_strided_slice %31 {offsets = [2, 0], sizes = [1, 8], strides = [1, 1]} : vector<15x8xf32> to vector<1x8xf32>
    %42 = vector.broadcast %41 : vector<1x8xf32> to vector<2x8xf32>
    %43 = arith.mulf %5, %42 : vector<2x8xf32>
    %44 = arith.addf %40, %43 : vector<2x8xf32>
    %45 = vector.extract_strided_slice %31 {offsets = [3, 0], sizes = [1, 8], strides = [1, 1]} : vector<15x8xf32> to vector<1x8xf32>
    %46 = vector.broadcast %45 : vector<1x8xf32> to vector<2x8xf32>
    %47 = arith.mulf %7, %46 : vector<2x8xf32>
    %48 = arith.addf %44, %47 : vector<2x8xf32>
    %49 = vector.extract_strided_slice %31 {offsets = [4, 0], sizes = [1, 8], strides = [1, 1]} : vector<15x8xf32> to vector<1x8xf32>
    %50 = vector.broadcast %49 : vector<1x8xf32> to vector<2x8xf32>
    %51 = arith.mulf %9, %50 : vector<2x8xf32>
    %52 = arith.addf %48, %51 : vector<2x8xf32>
    %53 = vector.extract_strided_slice %31 {offsets = [5, 0], sizes = [1, 8], strides = [1, 1]} : vector<15x8xf32> to vector<1x8xf32>
    %54 = vector.broadcast %53 : vector<1x8xf32> to vector<2x8xf32>
    %55 = arith.mulf %11, %54 : vector<2x8xf32>
    %56 = arith.addf %52, %55 : vector<2x8xf32>
    %57 = vector.extract_strided_slice %31 {offsets = [6, 0], sizes = [1, 8], strides = [1, 1]} : vector<15x8xf32> to vector<1x8xf32>
    %58 = vector.broadcast %57 : vector<1x8xf32> to vector<2x8xf32>
    %59 = arith.mulf %13, %58 : vector<2x8xf32>
    %60 = arith.addf %56, %59 : vector<2x8xf32>
    %61 = vector.extract_strided_slice %31 {offsets = [7, 0], sizes = [1, 8], strides = [1, 1]} : vector<15x8xf32> to vector<1x8xf32>
    %62 = vector.broadcast %61 : vector<1x8xf32> to vector<2x8xf32>
    %63 = arith.mulf %15, %62 : vector<2x8xf32>
    %64 = arith.addf %60, %63 : vector<2x8xf32>
    %65 = vector.extract_strided_slice %31 {offsets = [8, 0], sizes = [1, 8], strides = [1, 1]} : vector<15x8xf32> to vector<1x8xf32>
    %66 = vector.broadcast %65 : vector<1x8xf32> to vector<2x8xf32>
    %67 = arith.mulf %17, %66 : vector<2x8xf32>
    %68 = arith.addf %64, %67 : vector<2x8xf32>
    %69 = vector.extract_strided_slice %31 {offsets = [9, 0], sizes = [1, 8], strides = [1, 1]} : vector<15x8xf32> to vector<1x8xf32>
    %70 = vector.broadcast %69 : vector<1x8xf32> to vector<2x8xf32>
    %71 = arith.mulf %19, %70 : vector<2x8xf32>
    %72 = arith.addf %68, %71 : vector<2x8xf32>
    %73 = vector.extract_strided_slice %31 {offsets = [10, 0], sizes = [1, 8], strides = [1, 1]} : vector<15x8xf32> to vector<1x8xf32>
    %74 = vector.broadcast %73 : vector<1x8xf32> to vector<2x8xf32>
    %75 = arith.mulf %21, %74 : vector<2x8xf32>
    %76 = arith.addf %72, %75 : vector<2x8xf32>
    %77 = vector.extract_strided_slice %31 {offsets = [11, 0], sizes = [1, 8], strides = [1, 1]} : vector<15x8xf32> to vector<1x8xf32>
    %78 = vector.broadcast %77 : vector<1x8xf32> to vector<2x8xf32>
    %79 = arith.mulf %23, %78 : vector<2x8xf32>
    %80 = arith.addf %76, %79 : vector<2x8xf32>
    %81 = vector.extract_strided_slice %31 {offsets = [12, 0], sizes = [1, 8], strides = [1, 1]} : vector<15x8xf32> to vector<1x8xf32>
    %82 = vector.broadcast %81 : vector<1x8xf32> to vector<2x8xf32>
    %83 = arith.mulf %25, %82 : vector<2x8xf32>
    %84 = arith.addf %80, %83 : vector<2x8xf32>
    %85 = vector.extract_strided_slice %31 {offsets = [13, 0], sizes = [1, 8], strides = [1, 1]} : vector<15x8xf32> to vector<1x8xf32>
    %86 = vector.broadcast %85 : vector<1x8xf32> to vector<2x8xf32>
    %87 = arith.mulf %27, %86 : vector<2x8xf32>
    %88 = arith.addf %84, %87 : vector<2x8xf32>
    %89 = vector.extract_strided_slice %31 {offsets = [14, 0], sizes = [1, 8], strides = [1, 1]} : vector<15x8xf32> to vector<1x8xf32>
    %90 = vector.broadcast %89 : vector<1x8xf32> to vector<2x8xf32>
    %91 = arith.mulf %29, %90 : vector<2x8xf32>
    %92 = arith.addf %88, %91 : vector<2x8xf32>
    %c0_60 = arith.constant 0 : index
    %c0_61 = arith.constant 0 : index
    %c0_62 = arith.constant 0 : index
    %93 = vector.load %arg4[%c0_60, %c0_61, %c0_62] : memref<4x1x8xf32, #tpu.memory_space<vmem>>, vector<1x1x8xf32>
    %94 = vector.shape_cast %93 : vector<1x1x8xf32> to vector<1x8xf32>
    %95 = vector.broadcast %94 : vector<1x8xf32> to vector<2x8xf32>
    %96 = arith.addf %92, %95 : vector<2x8xf32>
    %c0_63 = arith.constant 0 : index
    %c0_64 = arith.constant 0 : index
    %c0_65 = arith.constant 0 : index
    %97 = vector.load %arg5[%c0_63, %c0_64, %c0_65] : memref<4x2x8xf32, #tpu.memory_space<vmem>>, vector<1x2x8xf32>
    %98 = vector.shape_cast %97 : vector<1x2x8xf32> to vector<2x8xf32>
    %99 = vector.shape_cast %96 : vector<2x8xf32> to vector<1x2x8xf32>
    tpu.vector_store %arg5[%c0_63, %c0_64, %c0_65], %99 {strides = array<i32>} : memref<4x2x8xf32, #tpu.memory_space<vmem>>, vector<1x2x8xf32>,
    %c1_66 = arith.constant 1 : index
    %c0_67 = arith.constant 0 : index
    %c0_68 = arith.constant 0 : index
    %100 = vector.load %arg3[%c1_66, %c0_67, %c0_68] : memref<4x15x8xf32, #tpu.memory_space<vmem>>, vector<1x15x8xf32>
    %101 = vector.shape_cast %100 : vector<1x15x8xf32> to vector<15x8xf32>
    %cst_69 = arith.constant 0.000000e+00 : f32
    %102 = vector.broadcast %cst_69 : f32 to vector<2x8xf32>
    %103 = vector.extract_strided_slice %101 {offsets = [0, 0], sizes = [1, 8], strides = [1, 1]} : vector<15x8xf32> to vector<1x8xf32>
    %104 = vector.broadcast %103 : vector<1x8xf32> to vector<2x8xf32>
    %105 = arith.mulf %1, %104 : vector<2x8xf32>
    %106 = arith.addf %102, %105 : vector<2x8xf32>
    %107 = vector.extract_strided_slice %101 {offsets = [1, 0], sizes = [1, 8], strides = [1, 1]} : vector<15x8xf32> to vector<1x8xf32>
    %108 = vector.broadcast %107 : vector<1x8xf32> to vector<2x8xf32>
    %109 = arith.mulf %3, %108 : vector<2x8xf32>
    %110 = arith.addf %106, %109 : vector<2x8xf32>
    %111 = vector.extract_strided_slice %101 {offsets = [2, 0], sizes = [1, 8], strides = [1, 1]} : vector<15x8xf32> to vector<1x8xf32>
    %112 = vector.broadcast %111 : vector<1x8xf32> to vector<2x8xf32>
    %113 = arith.mulf %5, %112 : vector<2x8xf32>
    %114 = arith.addf %110, %113 : vector<2x8xf32>
    %115 = vector.extract_strided_slice %101 {offsets = [3, 0], sizes = [1, 8], strides = [1, 1]} : vector<15x8xf32> to vector<1x8xf32>
    %116 = vector.broadcast %115 : vector<1x8xf32> to vector<2x8xf32>
    %117 = arith.mulf %7, %116 : vector<2x8xf32>
    %118 = arith.addf %114, %117 : vector<2x8xf32>
    %119 = vector.extract_strided_slice %101 {offsets = [4, 0], sizes = [1, 8], strides = [1, 1]} : vector<15x8xf32> to vector<1x8xf32>
    %120 = vector.broadcast %119 : vector<1x8xf32> to vector<2x8xf32>
    %121 = arith.mulf %9, %120 : vector<2x8xf32>
    %122 = arith.addf %118, %121 : vector<2x8xf32>
    %123 = vector.extract_strided_slice %101 {offsets = [5, 0], sizes = [1, 8], strides = [1, 1]} : vector<15x8xf32> to vector<1x8xf32>
    %124 = vector.broadcast %123 : vector<1x8xf32> to vector<2x8xf32>
    %125 = arith.mulf %11, %124 : vector<2x8xf32>
    %126 = arith.addf %122, %125 : vector<2x8xf32>
    %127 = vector.extract_strided_slice %101 {offsets = [6, 0], sizes = [1, 8], strides = [1, 1]} : vector<15x8xf32> to vector<1x8xf32>
    %128 = vector.broadcast %127 : vector<1x8xf32> to vector<2x8xf32>
    %129 = arith.mulf %13, %128 : vector<2x8xf32>
    %130 = arith.addf %126, %129 : vector<2x8xf32>
    %131 = vector.extract_strided_slice %101 {offsets = [7, 0], sizes = [1, 8], strides = [1, 1]} : vector<15x8xf32> to vector<1x8xf32>
    %132 = vector.broadcast %131 : vector<1x8xf32> to vector<2x8xf32>
    %133 = arith.mulf %15, %132 : vector<2x8xf32>
    %134 = arith.addf %130, %133 : vector<2x8xf32>
    %135 = vector.extract_strided_slice %101 {offsets = [8, 0], sizes = [1, 8], strides = [1, 1]} : vector<15x8xf32> to vector<1x8xf32>
    %136 = vector.broadcast %135 : vector<1x8xf32> to vector<2x8xf32>
    %137 = arith.mulf %17, %136 : vector<2x8xf32>
    %138 = arith.addf %134, %137 : vector<2x8xf32>
    %139 = vector.extract_strided_slice %101 {offsets = [9, 0], sizes = [1, 8], strides = [1, 1]} : vector<15x8xf32> to vector<1x8xf32>
    %140 = vector.broadcast %139 : vector<1x8xf32> to vector<2x8xf32>
    %141 = arith.mulf %19, %140 : vector<2x8xf32>
    %142 = arith.addf %138, %141 : vector<2x8xf32>
    %143 = vector.extract_strided_slice %101 {offsets = [10, 0], sizes = [1, 8], strides = [1, 1]} : vector<15x8xf32> to vector<1x8xf32>
    %144 = vector.broadcast %143 : vector<1x8xf32> to vector<2x8xf32>
    %145 = arith.mulf %21, %144 : vector<2x8xf32>
    %146 = arith.addf %142, %145 : vector<2x8xf32>
    %147 = vector.extract_strided_slice %101 {offsets = [11, 0], sizes = [1, 8], strides = [1, 1]} : vector<15x8xf32> to vector<1x8xf32>
    %148 = vector.broadcast %147 : vector<1x8xf32> to vector<2x8xf32>
    %149 = arith.mulf %23, %148 : vector<2x8xf32>
    %150 = arith.addf %146, %149 : vector<2x8xf32>
    %151 = vector.extract_strided_slice %101 {offsets = [12, 0], sizes = [1, 8], strides = [1, 1]} : vector<15x8xf32> to vector<1x8xf32>
    %152 = vector.broadcast %151 : vector<1x8xf32> to vector<2x8xf32>
    %153 = arith.mulf %25, %152 : vector<2x8xf32>
    %154 = arith.addf %150, %153 : vector<2x8xf32>
    %155 = vector.extract_strided_slice %101 {offsets = [13, 0], sizes = [1, 8], strides = [1, 1]} : vector<15x8xf32> to vector<1x8xf32>
    %156 = vector.broadcast %155 : vector<1x8xf32> to vector<2x8xf32>
    %157 = arith.mulf %27, %156 : vector<2x8xf32>
    %158 = arith.addf %154, %157 : vector<2x8xf32>
    %159 = vector.extract_strided_slice %101 {offsets = [14, 0], sizes = [1, 8], strides = [1, 1]} : vector<15x8xf32> to vector<1x8xf32>
    %160 = vector.broadcast %159 : vector<1x8xf32> to vector<2x8xf32>
    %161 = arith.mulf %29, %160 : vector<2x8xf32>
    %162 = arith.addf %158, %161 : vector<2x8xf32>
    %c1_70 = arith.constant 1 : index
    %c0_71 = arith.constant 0 : index
    %c0_72 = arith.constant 0 : index
    %163 = vector.load %arg4[%c1_70, %c0_71, %c0_72] : memref<4x1x8xf32, #tpu.memory_space<vmem>>, vector<1x1x8xf32>
    %164 = vector.shape_cast %163 : vector<1x1x8xf32> to vector<1x8xf32>
    %165 = vector.broadcast %164 : vector<1x8xf32> to vector<2x8xf32>
    %166 = arith.addf %162, %165 : vector<2x8xf32>
    %c1_73 = arith.constant 1 : index
    %c0_74 = arith.constant 0 : index
    %c0_75 = arith.constant 0 : index
    %167 = vector.load %arg5[%c1_73, %c0_74, %c0_75] : memref<4x2x8xf32, #tpu.memory_space<vmem>>, vector<1x2x8xf32>
    %168 = vector.shape_cast %167 : vector<1x2x8xf32> to vector<2x8xf32>
    %169 = vector.shape_cast %166 : vector<2x8xf32> to vector<1x2x8xf32>
    tpu.vector_store %arg5[%c1_73, %c0_74, %c0_75], %169 {strides = array<i32>} : memref<4x2x8xf32, #tpu.memory_space<vmem>>, vector<1x2x8xf32>,
    %c2_76 = arith.constant 2 : index
    %c0_77 = arith.constant 0 : index
    %c0_78 = arith.constant 0 : index
    %170 = vector.load %arg3[%c2_76, %c0_77, %c0_78] : memref<4x15x8xf32, #tpu.memory_space<vmem>>, vector<1x15x8xf32>
    %171 = vector.shape_cast %170 : vector<1x15x8xf32> to vector<15x8xf32>
    %cst_79 = arith.constant 0.000000e+00 : f32
    %172 = vector.broadcast %cst_79 : f32 to vector<2x8xf32>
    %173 = vector.extract_strided_slice %171 {offsets = [0, 0], sizes = [1, 8], strides = [1, 1]} : vector<15x8xf32> to vector<1x8xf32>
    %174 = vector.broadcast %173 : vector<1x8xf32> to vector<2x8xf32>
    %175 = arith.mulf %1, %174 : vector<2x8xf32>
    %176 = arith.addf %172, %175 : vector<2x8xf32>
    %177 = vector.extract_strided_slice %171 {offsets = [1, 0], sizes = [1, 8], strides = [1, 1]} : vector<15x8xf32> to vector<1x8xf32>
    %178 = vector.broadcast %177 : vector<1x8xf32> to vector<2x8xf32>
    %179 = arith.mulf %3, %178 : vector<2x8xf32>
    %180 = arith.addf %176, %179 : vector<2x8xf32>
    %181 = vector.extract_strided_slice %171 {offsets = [2, 0], sizes = [1, 8], strides = [1, 1]} : vector<15x8xf32> to vector<1x8xf32>
    %182 = vector.broadcast %181 : vector<1x8xf32> to vector<2x8xf32>
    %183 = arith.mulf %5, %182 : vector<2x8xf32>
    %184 = arith.addf %180, %183 : vector<2x8xf32>
    %185 = vector.extract_strided_slice %171 {offsets = [3, 0], sizes = [1, 8], strides = [1, 1]} : vector<15x8xf32> to vector<1x8xf32>
    %186 = vector.broadcast %185 : vector<1x8xf32> to vector<2x8xf32>
    %187 = arith.mulf %7, %186 : vector<2x8xf32>
    %188 = arith.addf %184, %187 : vector<2x8xf32>
    %189 = vector.extract_strided_slice %171 {offsets = [4, 0], sizes = [1, 8], strides = [1, 1]} : vector<15x8xf32> to vector<1x8xf32>
    %190 = vector.broadcast %189 : vector<1x8xf32> to vector<2x8xf32>
    %191 = arith.mulf %9, %190 : vector<2x8xf32>
    %192 = arith.addf %188, %191 : vector<2x8xf32>
    %193 = vector.extract_strided_slice %171 {offsets = [5, 0], sizes = [1, 8], strides = [1, 1]} : vector<15x8xf32> to vector<1x8xf32>
    %194 = vector.broadcast %193 : vector<1x8xf32> to vector<2x8xf32>
    %195 = arith.mulf %11, %194 : vector<2x8xf32>
    %196 = arith.addf %192, %195 : vector<2x8xf32>
    %197 = vector.extract_strided_slice %171 {offsets = [6, 0], sizes = [1, 8], strides = [1, 1]} : vector<15x8xf32> to vector<1x8xf32>
    %198 = vector.broadcast %197 : vector<1x8xf32> to vector<2x8xf32>
    %199 = arith.mulf %13, %198 : vector<2x8xf32>
    %200 = arith.addf %196, %199 : vector<2x8xf32>
    %201 = vector.extract_strided_slice %171 {offsets = [7, 0], sizes = [1, 8], strides = [1, 1]} : vector<15x8xf32> to vector<1x8xf32>
    %202 = vector.broadcast %201 : vector<1x8xf32> to vector<2x8xf32>
    %203 = arith.mulf %15, %202 : vector<2x8xf32>
    %204 = arith.addf %200, %203 : vector<2x8xf32>
    %205 = vector.extract_strided_slice %171 {offsets = [8, 0], sizes = [1, 8], strides = [1, 1]} : vector<15x8xf32> to vector<1x8xf32>
    %206 = vector.broadcast %205 : vector<1x8xf32> to vector<2x8xf32>
    %207 = arith.mulf %17, %206 : vector<2x8xf32>
    %208 = arith.addf %204, %207 : vector<2x8xf32>
    %209 = vector.extract_strided_slice %171 {offsets = [9, 0], sizes = [1, 8], strides = [1, 1]} : vector<15x8xf32> to vector<1x8xf32>
    %210 = vector.broadcast %209 : vector<1x8xf32> to vector<2x8xf32>
    %211 = arith.mulf %19, %210 : vector<2x8xf32>
    %212 = arith.addf %208, %211 : vector<2x8xf32>
    %213 = vector.extract_strided_slice %171 {offsets = [10, 0], sizes = [1, 8], strides = [1, 1]} : vector<15x8xf32> to vector<1x8xf32>
    %214 = vector.broadcast %213 : vector<1x8xf32> to vector<2x8xf32>
    %215 = arith.mulf %21, %214 : vector<2x8xf32>
    %216 = arith.addf %212, %215 : vector<2x8xf32>
    %217 = vector.extract_strided_slice %171 {offsets = [11, 0], sizes = [1, 8], strides = [1, 1]} : vector<15x8xf32> to vector<1x8xf32>
    %218 = vector.broadcast %217 : vector<1x8xf32> to vector<2x8xf32>
    %219 = arith.mulf %23, %218 : vector<2x8xf32>
    %220 = arith.addf %216, %219 : vector<2x8xf32>
    %221 = vector.extract_strided_slice %171 {offsets = [12, 0], sizes = [1, 8], strides = [1, 1]} : vector<15x8xf32> to vector<1x8xf32>
    %222 = vector.broadcast %221 : vector<1x8xf32> to vector<2x8xf32>
    %223 = arith.mulf %25, %222 : vector<2x8xf32>
    %224 = arith.addf %220, %223 : vector<2x8xf32>
    %225 = vector.extract_strided_slice %171 {offsets = [13, 0], sizes = [1, 8], strides = [1, 1]} : vector<15x8xf32> to vector<1x8xf32>
    %226 = vector.broadcast %225 : vector<1x8xf32> to vector<2x8xf32>
    %227 = arith.mulf %27, %226 : vector<2x8xf32>
    %228 = arith.addf %224, %227 : vector<2x8xf32>
    %229 = vector.extract_strided_slice %171 {offsets = [14, 0], sizes = [1, 8], strides = [1, 1]} : vector<15x8xf32> to vector<1x8xf32>
    %230 = vector.broadcast %229 : vector<1x8xf32> to vector<2x8xf32>
    %231 = arith.mulf %29, %230 : vector<2x8xf32>
    %232 = arith.addf %228, %231 : vector<2x8xf32>
    %c2_80 = arith.constant 2 : index
    %c0_81 = arith.constant 0 : index
    %c0_82 = arith.constant 0 : index
    %233 = vector.load %arg4[%c2_80, %c0_81, %c0_82] : memref<4x1x8xf32, #tpu.memory_space<vmem>>, vector<1x1x8xf32>
    %234 = vector.shape_cast %233 : vector<1x1x8xf32> to vector<1x8xf32>
    %235 = vector.broadcast %234 : vector<1x8xf32> to vector<2x8xf32>
    %236 = arith.addf %232, %235 : vector<2x8xf32>
    %c2_83 = arith.constant 2 : index
    %c0_84 = arith.constant 0 : index
    %c0_85 = arith.constant 0 : index
    %237 = vector.load %arg5[%c2_83, %c0_84, %c0_85] : memref<4x2x8xf32, #tpu.memory_space<vmem>>, vector<1x2x8xf32>
    %238 = vector.shape_cast %237 : vector<1x2x8xf32> to vector<2x8xf32>
    %239 = vector.shape_cast %236 : vector<2x8xf32> to vector<1x2x8xf32>
    tpu.vector_store %arg5[%c2_83, %c0_84, %c0_85], %239 {strides = array<i32>} : memref<4x2x8xf32, #tpu.memory_space<vmem>>, vector<1x2x8xf32>,
    %c3 = arith.constant 3 : index
    %c0_86 = arith.constant 0 : index
    %c0_87 = arith.constant 0 : index
    %240 = vector.load %arg3[%c3, %c0_86, %c0_87] : memref<4x15x8xf32, #tpu.memory_space<vmem>>, vector<1x15x8xf32>
    %241 = vector.shape_cast %240 : vector<1x15x8xf32> to vector<15x8xf32>
    %cst_88 = arith.constant 0.000000e+00 : f32
    %242 = vector.broadcast %cst_88 : f32 to vector<2x8xf32>
    %243 = vector.extract_strided_slice %241 {offsets = [0, 0], sizes = [1, 8], strides = [1, 1]} : vector<15x8xf32> to vector<1x8xf32>
    %244 = vector.broadcast %243 : vector<1x8xf32> to vector<2x8xf32>
    %245 = arith.mulf %1, %244 : vector<2x8xf32>
    %246 = arith.addf %242, %245 : vector<2x8xf32>
    %247 = vector.extract_strided_slice %241 {offsets = [1, 0], sizes = [1, 8], strides = [1, 1]} : vector<15x8xf32> to vector<1x8xf32>
    %248 = vector.broadcast %247 : vector<1x8xf32> to vector<2x8xf32>
    %249 = arith.mulf %3, %248 : vector<2x8xf32>
    %250 = arith.addf %246, %249 : vector<2x8xf32>
    %251 = vector.extract_strided_slice %241 {offsets = [2, 0], sizes = [1, 8], strides = [1, 1]} : vector<15x8xf32> to vector<1x8xf32>
    %252 = vector.broadcast %251 : vector<1x8xf32> to vector<2x8xf32>
    %253 = arith.mulf %5, %252 : vector<2x8xf32>
    %254 = arith.addf %250, %253 : vector<2x8xf32>
    %255 = vector.extract_strided_slice %241 {offsets = [3, 0], sizes = [1, 8], strides = [1, 1]} : vector<15x8xf32> to vector<1x8xf32>
    %256 = vector.broadcast %255 : vector<1x8xf32> to vector<2x8xf32>
    %257 = arith.mulf %7, %256 : vector<2x8xf32>
    %258 = arith.addf %254, %257 : vector<2x8xf32>
    %259 = vector.extract_strided_slice %241 {offsets = [4, 0], sizes = [1, 8], strides = [1, 1]} : vector<15x8xf32> to vector<1x8xf32>
    %260 = vector.broadcast %259 : vector<1x8xf32> to vector<2x8xf32>
    %261 = arith.mulf %9, %260 : vector<2x8xf32>
    %262 = arith.addf %258, %261 : vector<2x8xf32>
    %263 = vector.extract_strided_slice %241 {offsets = [5, 0], sizes = [1, 8], strides = [1, 1]} : vector<15x8xf32> to vector<1x8xf32>
    %264 = vector.broadcast %263 : vector<1x8xf32> to vector<2x8xf32>
    %265 = arith.mulf %11, %264 : vector<2x8xf32>
    %266 = arith.addf %262, %265 : vector<2x8xf32>
    %267 = vector.extract_strided_slice %241 {offsets = [6, 0], sizes = [1, 8], strides = [1, 1]} : vector<15x8xf32> to vector<1x8xf32>
    %268 = vector.broadcast %267 : vector<1x8xf32> to vector<2x8xf32>
    %269 = arith.mulf %13, %268 : vector<2x8xf32>
    %270 = arith.addf %266, %269 : vector<2x8xf32>
    %271 = vector.extract_strided_slice %241 {offsets = [7, 0], sizes = [1, 8], strides = [1, 1]} : vector<15x8xf32> to vector<1x8xf32>
    %272 = vector.broadcast %271 : vector<1x8xf32> to vector<2x8xf32>
    %273 = arith.mulf %15, %272 : vector<2x8xf32>
    %274 = arith.addf %270, %273 : vector<2x8xf32>
    %275 = vector.extract_strided_slice %241 {offsets = [8, 0], sizes = [1, 8], strides = [1, 1]} : vector<15x8xf32> to vector<1x8xf32>
    %276 = vector.broadcast %275 : vector<1x8xf32> to vector<2x8xf32>
    %277 = arith.mulf %17, %276 : vector<2x8xf32>
    %278 = arith.addf %274, %277 : vector<2x8xf32>
    %279 = vector.extract_strided_slice %241 {offsets = [9, 0], sizes = [1, 8], strides = [1, 1]} : vector<15x8xf32> to vector<1x8xf32>
    %280 = vector.broadcast %279 : vector<1x8xf32> to vector<2x8xf32>
    %281 = arith.mulf %19, %280 : vector<2x8xf32>
    %282 = arith.addf %278, %281 : vector<2x8xf32>
    %283 = vector.extract_strided_slice %241 {offsets = [10, 0], sizes = [1, 8], strides = [1, 1]} : vector<15x8xf32> to vector<1x8xf32>
    %284 = vector.broadcast %283 : vector<1x8xf32> to vector<2x8xf32>
    %285 = arith.mulf %21, %284 : vector<2x8xf32>
    %286 = arith.addf %282, %285 : vector<2x8xf32>
    %287 = vector.extract_strided_slice %241 {offsets = [11, 0], sizes = [1, 8], strides = [1, 1]} : vector<15x8xf32> to vector<1x8xf32>
    %288 = vector.broadcast %287 : vector<1x8xf32> to vector<2x8xf32>
    %289 = arith.mulf %23, %288 : vector<2x8xf32>
    %290 = arith.addf %286, %289 : vector<2x8xf32>
    %291 = vector.extract_strided_slice %241 {offsets = [12, 0], sizes = [1, 8], strides = [1, 1]} : vector<15x8xf32> to vector<1x8xf32>
    %292 = vector.broadcast %291 : vector<1x8xf32> to vector<2x8xf32>
    %293 = arith.mulf %25, %292 : vector<2x8xf32>
    %294 = arith.addf %290, %293 : vector<2x8xf32>
    %295 = vector.extract_strided_slice %241 {offsets = [13, 0], sizes = [1, 8], strides = [1, 1]} : vector<15x8xf32> to vector<1x8xf32>
    %296 = vector.broadcast %295 : vector<1x8xf32> to vector<2x8xf32>
    %297 = arith.mulf %27, %296 : vector<2x8xf32>
    %298 = arith.addf %294, %297 : vector<2x8xf32>
    %299 = vector.extract_strided_slice %241 {offsets = [14, 0], sizes = [1, 8], strides = [1, 1]} : vector<15x8xf32> to vector<1x8xf32>
    %300 = vector.broadcast %299 : vector<1x8xf32> to vector<2x8xf32>
    %301 = arith.mulf %29, %300 : vector<2x8xf32>
    %302 = arith.addf %298, %301 : vector<2x8xf32>
    %c3_89 = arith.constant 3 : index
    %c0_90 = arith.constant 0 : index
    %c0_91 = arith.constant 0 : index
    %303 = vector.load %arg4[%c3_89, %c0_90, %c0_91] : memref<4x1x8xf32, #tpu.memory_space<vmem>>, vector<1x1x8xf32>
    %304 = vector.shape_cast %303 : vector<1x1x8xf32> to vector<1x8xf32>
    %305 = vector.broadcast %304 : vector<1x8xf32> to vector<2x8xf32>
    %306 = arith.addf %302, %305 : vector<2x8xf32>
    %c3_92 = arith.constant 3 : index
    %c0_93 = arith.constant 0 : index
    %c0_94 = arith.constant 0 : index
    %307 = vector.load %arg5[%c3_92, %c0_93, %c0_94] : memref<4x2x8xf32, #tpu.memory_space<vmem>>, vector<1x2x8xf32>
    %308 = vector.shape_cast %307 : vector<1x2x8xf32> to vector<2x8xf32>
    %309 = vector.shape_cast %306 : vector<2x8xf32> to vector<1x2x8xf32>
    tpu.vector_store %arg5[%c3_92, %c0_93, %c0_94], %309 {strides = array<i32>} : memref<4x2x8xf32, #tpu.memory_space<vmem>>, vector<1x2x8xf32>,
    return
  }
  func.func @transform_0(%arg0: i32, %arg1: i32) -> (i32, i32, i32, i32) {
    %c0_i32 = arith.constant 0 : i32
    %c0_i32_0 = arith.constant 0 : i32
    %c0_i32_1 = arith.constant 0 : i32
    %c0_i32_2 = arith.constant 0 : i32
    return %c0_i32, %c0_i32_0, %arg0, %c0_i32_1 : i32, i32, i32, i32
  }
  func.func @transform_1(%arg0: i32, %arg1: i32) -> (i32, i32, i32) {
    %c0_i32 = arith.constant 0 : i32
    %c0_i32_0 = arith.constant 0 : i32
    %c0_i32_1 = arith.constant 0 : i32
    return %arg1, %c0_i32, %c0_i32_0 : i32, i32, i32
  }
  func.func @transform_2(%arg0: i32, %arg1: i32) -> (i32, i32, i32) {
    %c0_i32 = arith.constant 0 : i32
    %c0_i32_0 = arith.constant 0 : i32
    %c0_i32_1 = arith.constant 0 : i32
    return %arg1, %c0_i32, %c0_i32_0 : i32, i32, i32
  }
  func.func @transform_3(%arg0: i32, %arg1: i32) -> (i32, i32, i32) {
    %c0_i32 = arith.constant 0 : i32
    %c0_i32_0 = arith.constant 0 : i32
    return %arg1, %arg0, %c0_i32 : i32, i32, i32
  }
}

</mosaic_0001>

<llo_original>
// kernel: local_linear_forward.1
$region0: #{local_linear_forward.1}
  #allocation0 [shape = 'u32[]', space=smem, size = 0x4, offset = 0x4, fixed_abs, tag = 'smem constant byte address 0x4 - core index']
  #allocation1 [shape = 'u32[144,128]{1,0:T(1,128)}', space=vmem, size = 0x12000, scoped, tag = 'internal scratch']
  %s0 = inlined_call_operand.vmem [shape: f32[3,2,2,10], index: 0, kind: input, shape index: {}]
  %s1 = inlined_call_operand.vmem [shape: f32[4,15,8], index: 1, kind: input, shape index: {}]
  %s2 = inlined_call_operand.vmem [shape: f32[4,1,8], index: 2, kind: input, shape index: {}]
  %s3 = inlined_call_operand.vmem [shape: f32[4,2,8], index: 3, kind: output, shape index: {}]
  %s4 = sld [smem:[#allocation0]]
  $region22: #{local_linear_forward.1} parent=0
    _
  %s6 = ssub.s32 1, %s4
  %s7 = scalar_select 0, %s6, %s4
  // Predicated region
  $region2: #{local_linear_forward.1} parent=0 // pred_check
    _
  $region3: #{local_linear_forward.1} parent=0 // pred_check_branch
    %9 = sbr.rel (0) target = $region5
  $region4: #{local_linear_forward.1} parent=0 // pred_region
    _
  $region5: #{local_linear_forward.1} parent=0 // pred_fallthru
    _
  // Predicated region
  $region6: #{local_linear_forward.1} parent=0 // pred_check
    _
  $region7: #{local_linear_forward.1} parent=0 // pred_check_branch
    %11 = sbr.rel (0) target = $region9
  $region8: #{local_linear_forward.1} parent=0 // pred_region
    _
  $region9: #{local_linear_forward.1} parent=0 // pred_fallthru
    _
  // Predicated region
  $region10: #{local_linear_forward.1} parent=0 // pred_check
    _
  $region11: #{local_linear_forward.1} parent=0 // pred_check_branch
    %13 = sbr.rel (0) target = $region13
  $region12: #{local_linear_forward.1} parent=0 // pred_region
    _
  $region13: #{local_linear_forward.1} parent=0 // pred_fallthru
    _
  %v14 = vld [vmem:[%s0] sm:$0x3]
  %s15 = scalar_lea.vmem %s0, 2
  %v16 = vld [vmem:[%s15] sm:$0x3]
  %s17 = scalar_lea.vmem %s0, 4
  %v18 = vld [vmem:[%s17] sm:$0x3]
  %s19 = scalar_lea.vmem %s0, 6
  %v20 = vld [vmem:[%s19] sm:$0x3]
  %s21 = scalar_lea.vmem %s0, 8
  %v22 = vld [vmem:[%s21] sm:$0x3]
  %s23 = scalar_lea.vmem %s0, 10
  %v24 = vld [vmem:[%s23] sm:$0x3]
  %v25 = vld [vmem:[%s1] sm:$0xff]
  %v26 = vld [vmem:[%s1 + $0x8] sm:$0x7f]
  %v27 = vlaneseq
  %v28 = vshrl.u32 %v27, 7
  %v29 = vsub.s32 0, %v28
  %v30 = vrot.slane %v25, %v29
  %v31 = vmul.f32 %v14, %v30
  %v32 = vadd.f32 %v31, 0.0
  %v33 = vlaneseq
  %v34 = vshrl.u32 %v33, 7
  %v35 = vsub.s32 1, %v34
  %v36 = vrot.slane %v25, %v35
  %v37 = vmul.f32 %v16, %v36
  %v38 = vadd.f32 %v32, %v37
  %v39 = vlaneseq
  %v40 = vshrl.u32 %v39, 7
  %v41 = vsub.s32 2, %v40
  %v42 = vrot.slane %v25, %v41
  %44 = vrot.lane.b32.xlu0 %v42, 1
  %v45 = vpop.permute.xlu0 %44
  %v47 = vmul.f32 %v14, %v45
  %49 = vrot.lane.b32.xlu0 %v47, 127
  %v50 = vpop.permute.xlu0 %49
  %v52 = vadd.f32 %v38, %v50
  %v53 = vlaneseq
  %v54 = vshrl.u32 %v53, 7
  %v55 = vsub.s32 3, %v54
  %v56 = vrot.slane %v25, %v55
  %58 = vrot.lane.b32.xlu0 %v56, 1
  %v59 = vpop.permute.xlu0 %58
  %v61 = vmul.f32 %v16, %v59
  %63 = vrot.lane.b32.xlu0 %v61, 127
  %v64 = vpop.permute.xlu0 %63
  %v66 = vadd.f32 %v52, %v64
  %v67 = vlaneseq
  %v68 = vshrl.u32 %v67, 7
  %v69 = vsub.s32 4, %v68
  %v70 = vrot.slane %v25, %v69
  %72 = vrot.lane.b32.xlu0 %v70, 2
  %v73 = vpop.permute.xlu0 %72
  %v75 = vmul.f32 %v14, %v73
  %77 = vrot.lane.b32.xlu0 %v75, 126
  %v78 = vpop.permute.xlu0 %77
  %v80 = vadd.f32 %v66, %v78
  %v81 = vlaneseq
  %v82 = vshrl.u32 %v81, 7
  %v83 = vsub.s32 5, %v82
  %v84 = vrot.slane %v25, %v83
  %v85 = vmul.f32 %v18, %v84
  %v86 = vadd.f32 %v80, %v85
  %v87 = vlaneseq
  %v88 = vshrl.u32 %v87, 7
  %v89 = vsub.s32 6, %v88
  %v90 = vrot.slane %v25, %v89
  %v91 = vmul.f32 %v20, %v90
  %v92 = vadd.f32 %v86, %v91
  %v93 = vlaneseq
  %v94 = vshrl.u32 %v93, 7
  %v95 = vsub.s32 7, %v94
  %v96 = vrot.slane %v25, %v95
  %98 = vrot.lane.b32.xlu0 %v96, 1
  %v99 = vpop.permute.xlu0 %98
  %v101 = vmul.f32 %v18, %v99
  %103 = vrot.lane.b32.xlu0 %v101, 127
  %v104 = vpop.permute.xlu0 %103
  %v106 = vadd.f32 %v92, %v104
  %v107 = vlaneseq
  %v108 = vshrl.u32 %v107, 7
  %v109 = vsub.s32 0, %v108
  %v110 = vrot.slane %v26, %v109
  %112 = vrot.lane.b32.xlu0 %v110, 1
  %v113 = vpop.permute.xlu0 %112
  %v115 = vmul.f32 %v20, %v113
  %117 = vrot.lane.b32.xlu0 %v115, 127
  %v118 = vpop.permute.xlu0 %117
  %v120 = vadd.f32 %v106, %v118
  %v121 = vlaneseq
  %v122 = vshrl.u32 %v121, 7
  %v123 = vsub.s32 1, %v122
  %v124 = vrot.slane %v26, %v123
  %126 = vrot.lane.b32.xlu0 %v124, 2
  %v127 = vpop.permute.xlu0 %126
  %v129 = vmul.f32 %v18, %v127
  %131 = vrot.lane.b32.xlu0 %v129, 126
  %v132 = vpop.permute.xlu0 %131
  %v134 = vadd.f32 %v120, %v132
  %v135 = vlaneseq
  %v136 = vshrl.u32 %v135, 7
  %v137 = vsub.s32 2, %v136
  %v138 = vrot.slane %v26, %v137
  %v139 = vmul.f32 %v22, %v138
  %v140 = vadd.f32 %v134, %v139
  %v141 = vlaneseq
  %v142 = vshrl.u32 %v141, 7
  %v143 = vsub.s32 3, %v142
  %v144 = vrot.slane %v26, %v143
  %v145 = vmul.f32 %v24, %v144
  %v146 = vadd.f32 %v140, %v145
  %v147 = vlaneseq
  %v148 = vshrl.u32 %v147, 7
  %v149 = vsub.s32 4, %v148
  %v150 = vrot.slane %v26, %v149
  %152 = vrot.lane.b32.xlu0 %v150, 1
  %v153 = vpop.permute.xlu0 %152
  %v155 = vmul.f32 %v22, %v153
  %157 = vrot.lane.b32.xlu0 %v155, 127
  %v158 = vpop.permute.xlu0 %157
  %v160 = vadd.f32 %v146, %v158
  %v161 = vlaneseq
  %v162 = vshrl.u32 %v161, 7
  %v163 = vsub.s32 5, %v162
  %v164 = vrot.slane %v26, %v163
  %166 = vrot.lane.b32.xlu0 %v164, 1
  %v167 = vpop.permute.xlu0 %166
  %v169 = vmul.f32 %v24, %v167
  %171 = vrot.lane.b32.xlu0 %v169, 127
  %v172 = vpop.permute.xlu0 %171
  %v174 = vadd.f32 %v160, %v172
  %v175 = vlaneseq
  %v176 = vshrl.u32 %v175, 7
  %v177 = vsub.s32 6, %v176
  %v178 = vrot.slane %v26, %v177
  %180 = vrot.lane.b32.xlu0 %v178, 2
  %v181 = vpop.permute.xlu0 %180
  %v183 = vmul.f32 %v22, %v181
  %185 = vrot.lane.b32.xlu0 %v183, 126
  %v186 = vpop.permute.xlu0 %185
  %v188 = vadd.f32 %v174, %v186
  %v189 = vld [vmem:[%s2] sm:$0x1]
  %v191 = vlaneseq
  %v192 = vshrl.u32 %v191, 7
  %v193 = vsub.s32 0, %v192
  %v194 = vrot.slane %v189, %v193
  %v196 = vadd.f32 %v188, %v194
  %vm197 = vcmask 58368
  %198 = vst.msk [vmem:[%s3] sm:$0x3] %vm197, %v196
  %s199 = scalar_lea.vmem %s1, 16
  %v200 = vld [vmem:[%s199] sm:$0xff]
  %v201 = vld [vmem:[%s199 + $0x8] sm:$0x7f]
  %v202 = vlaneseq
  %v203 = vshrl.u32 %v202, 7
  %v204 = vsub.s32 0, %v203
  %v205 = vrot.slane %v200, %v204
  %v206 = vmul.f32 %v14, %v205
  %v207 = vadd.f32 %v206, 0.0
  %v208 = vlaneseq
  %v209 = vshrl.u32 %v208, 7
  %v210 = vsub.s32 1, %v209
  %v211 = vrot.slane %v200, %v210
  %v212 = vmul.f32 %v16, %v211
  %v213 = vadd.f32 %v207, %v212
  %v214 = vlaneseq
  %v215 = vshrl.u32 %v214, 7
  %v216 = vsub.s32 2, %v215
  %v217 = vrot.slane %v200, %v216
  %219 = vrot.lane.b32.xlu0 %v217, 1
  %v220 = vpop.permute.xlu0 %219
  %v222 = vmul.f32 %v14, %v220
  %224 = vrot.lane.b32.xlu0 %v222, 127
  %v225 = vpop.permute.xlu0 %224
  %v227 = vadd.f32 %v213, %v225
  %v228 = vlaneseq
  %v229 = vshrl.u32 %v228, 7
  %v230 = vsub.s32 3, %v229
  %v231 = vrot.slane %v200, %v230
  %233 = vrot.lane.b32.xlu0 %v231, 1
  %v234 = vpop.permute.xlu0 %233
  %v236 = vmul.f32 %v16, %v234
  %238 = vrot.lane.b32.xlu0 %v236, 127
  %v239 = vpop.permute.xlu0 %238
  %v241 = vadd.f32 %v227, %v239
  %v242 = vlaneseq
  %v243 = vshrl.u32 %v242, 7
  %v244 = vsub.s32 4, %v243
  %v245 = vrot.slane %v200, %v244
  %247 = vrot.lane.b32.xlu0 %v245, 2
  %v248 = vpop.permute.xlu0 %247
  %v250 = vmul.f32 %v14, %v248
  %252 = vrot.lane.b32.xlu0 %v250, 126
  %v253 = vpop.permute.xlu0 %252
  %v255 = vadd.f32 %v241, %v253
  %v256 = vlaneseq
  %v257 = vshrl.u32 %v256, 7
  %v258 = vsub.s32 5, %v257
  %v259 = vrot.slane %v200, %v258
  %v260 = vmul.f32 %v18, %v259
  %v261 = vadd.f32 %v255, %v260
  %v262 = vlaneseq
  %v263 = vshrl.u32 %v262, 7
  %v264 = vsub.s32 6, %v263
  %v265 = vrot.slane %v200, %v264
  %v266 = vmul.f32 %v20, %v265
  %v267 = vadd.f32 %v261, %v266
  %v268 = vlaneseq
  %v269 = vshrl.u32 %v268, 7
  %v270 = vsub.s32 7, %v269
  %v271 = vrot.slane %v200, %v270
  %273 = vrot.lane.b32.xlu0 %v271, 1
  %v274 = vpop.permute.xlu0 %273
  %v276 = vmul.f32 %v18, %v274
  %278 = vrot.lane.b32.xlu0 %v276, 127
  %v279 = vpop.permute.xlu0 %278
  %v281 = vadd.f32 %v267, %v279
  %v282 = vlaneseq
  %v283 = vshrl.u32 %v282, 7
  %v284 = vsub.s32 0, %v283
  %v285 = vrot.slane %v201, %v284
  %287 = vrot.lane.b32.xlu0 %v285, 1
  %v288 = vpop.permute.xlu0 %287
  %v290 = vmul.f32 %v20, %v288
  %292 = vrot.lane.b32.xlu0 %v290, 127
  %v293 = vpop.permute.xlu0 %292
  %v295 = vadd.f32 %v281, %v293
  %v296 = vlaneseq
  %v297 = vshrl.u32 %v296, 7
  %v298 = vsub.s32 1, %v297
  %v299 = vrot.slane %v201, %v298
  %301 = vrot.lane.b32.xlu0 %v299, 2
  %v302 = vpop.permute.xlu0 %301
  %v304 = vmul.f32 %v18, %v302
  %306 = vrot.lane.b32.xlu0 %v304, 126
  %v307 = vpop.permute.xlu0 %306
  %v309 = vadd.f32 %v295, %v307
  %v310 = vlaneseq
  %v311 = vshrl.u32 %v310, 7
  %v312 = vsub.s32 2, %v311
  %v313 = vrot.slane %v201, %v312
  %v314 = vmul.f32 %v22, %v313
  %v315 = vadd.f32 %v309, %v314
  %v316 = vlaneseq
  %v317 = vshrl.u32 %v316, 7
  %v318 = vsub.s32 3, %v317
  %v319 = vrot.slane %v201, %v318
  %v320 = vmul.f32 %v24, %v319
  %v321 = vadd.f32 %v315, %v320
  %v322 = vlaneseq
  %v323 = vshrl.u32 %v322, 7
  %v324 = vsub.s32 4, %v323
  %v325 = vrot.slane %v201, %v324
  %327 = vrot.lane.b32.xlu0 %v325, 1
  %v328 = vpop.permute.xlu0 %327
  %v330 = vmul.f32 %v22, %v328
  %332 = vrot.lane.b32.xlu0 %v330, 127
  %v333 = vpop.permute.xlu0 %332
  %v335 = vadd.f32 %v321, %v333
  %v336 = vlaneseq
  %v337 = vshrl.u32 %v336, 7
  %v338 = vsub.s32 5, %v337
  %v339 = vrot.slane %v201, %v338
  %341 = vrot.lane.b32.xlu0 %v339, 1
  %v342 = vpop.permute.xlu0 %341
  %v344 = vmul.f32 %v24, %v342
  %346 = vrot.lane.b32.xlu0 %v344, 127
  %v347 = vpop.permute.xlu0 %346
  %v349 = vadd.f32 %v335, %v347
  %v350 = vlaneseq
  %v351 = vshrl.u32 %v350, 7
  %v352 = vsub.s32 6, %v351
  %v353 = vrot.slane %v201, %v352
  %355 = vrot.lane.b32.xlu0 %v353, 2
  %v356 = vpop.permute.xlu0 %355
  %v358 = vmul.f32 %v22, %v356
  %360 = vrot.lane.b32.xlu0 %v358, 126
  %v361 = vpop.permute.xlu0 %360
  %v363 = vadd.f32 %v349, %v361
  %s364 = scalar_lea.vmem %s2, 1
  %v365 = vld [vmem:[%s364] sm:$0x1]
  %v367 = vlaneseq
  %v368 = vshrl.u32 %v367, 7
  %v369 = vsub.s32 0, %v368
  %v370 = vrot.slane %v365, %v369
  %v372 = vadd.f32 %v363, %v370
  %s373 = scalar_lea.vmem %s3, 2
  %374 = vst.msk [vmem:[%s373] sm:$0x3] %vm197, %v372
  %s375 = scalar_lea.vmem %s1, 32
  %v376 = vld [vmem:[%s375] sm:$0xff]
  %v377 = vld [vmem:[%s375 + $0x8] sm:$0x7f]
  %v378 = vlaneseq
  %v379 = vshrl.u32 %v378, 7
  %v380 = vsub.s32 0, %v379
  %v381 = vrot.slane %v376, %v380
  %v382 = vmul.f32 %v14, %v381
  %v383 = vadd.f32 %v382, 0.0
  %v384 = vlaneseq
  %v385 = vshrl.u32 %v384, 7
  %v386 = vsub.s32 1, %v385
  %v387 = vrot.slane %v376, %v386
  %v388 = vmul.f32 %v16, %v387
  %v389 = vadd.f32 %v383, %v388
  %v390 = vlaneseq
  %v391 = vshrl.u32 %v390, 7
  %v392 = vsub.s32 2, %v391
  %v393 = vrot.slane %v376, %v392
  %395 = vrot.lane.b32.xlu0 %v393, 1
  %v396 = vpop.permute.xlu0 %395
  %v398 = vmul.f32 %v14, %v396
  %400 = vrot.lane.b32.xlu0 %v398, 127
  %v401 = vpop.permute.xlu0 %400
  %v403 = vadd.f32 %v389, %v401
  %v404 = vlaneseq
  %v405 = vshrl.u32 %v404, 7
  %v406 = vsub.s32 3, %v405
  %v407 = vrot.slane %v376, %v406
  %409 = vrot.lane.b32.xlu0 %v407, 1
  %v410 = vpop.permute.xlu0 %409
  %v412 = vmul.f32 %v16, %v410
  %414 = vrot.lane.b32.xlu0 %v412, 127
  %v415 = vpop.permute.xlu0 %414
  %v417 = vadd.f32 %v403, %v415
  %v418 = vlaneseq
  %v419 = vshrl.u32 %v418, 7
  %v420 = vsub.s32 4, %v419
  %v421 = vrot.slane %v376, %v420
  %423 = vrot.lane.b32.xlu0 %v421, 2
  %v424 = vpop.permute.xlu0 %423
  %v426 = vmul.f32 %v14, %v424
  %428 = vrot.lane.b32.xlu0 %v426, 126
  %v429 = vpop.permute.xlu0 %428
  %v431 = vadd.f32 %v417, %v429
  %v432 = vlaneseq
  %v433 = vshrl.u32 %v432, 7
  %v434 = vsub.s32 5, %v433
  %v435 = vrot.slane %v376, %v434
  %v436 = vmul.f32 %v18, %v435
  %v437 = vadd.f32 %v431, %v436
  %v438 = vlaneseq
  %v439 = vshrl.u32 %v438, 7
  %v440 = vsub.s32 6, %v439
  %v441 = vrot.slane %v376, %v440
  %v442 = vmul.f32 %v20, %v441
  %v443 = vadd.f32 %v437, %v442
  %v444 = vlaneseq
  %v445 = vshrl.u32 %v444, 7
  %v446 = vsub.s32 7, %v445
  %v447 = vrot.slane %v376, %v446
  %449 = vrot.lane.b32.xlu0 %v447, 1
  %v450 = vpop.permute.xlu0 %449
  %v452 = vmul.f32 %v18, %v450
  %454 = vrot.lane.b32.xlu0 %v452, 127
  %v455 = vpop.permute.xlu0 %454
  %v457 = vadd.f32 %v443, %v455
  %v458 = vlaneseq
  %v459 = vshrl.u32 %v458, 7
  %v460 = vsub.s32 0, %v459
  %v461 = vrot.slane %v377, %v460
  %463 = vrot.lane.b32.xlu0 %v461, 1
  %v464 = vpop.permute.xlu0 %463
  %v466 = vmul.f32 %v20, %v464
  %468 = vrot.lane.b32.xlu0 %v466, 127
  %v469 = vpop.permute.xlu0 %468
  %v471 = vadd.f32 %v457, %v469
  %v472 = vlaneseq
  %v473 = vshrl.u32 %v472, 7
  %v474 = vsub.s32 1, %v473
  %v475 = vrot.slane %v377, %v474
  %477 = vrot.lane.b32.xlu0 %v475, 2
  %v478 = vpop.permute.xlu0 %477
  %v480 = vmul.f32 %v18, %v478
  %482 = vrot.lane.b32.xlu0 %v480, 126
  %v483 = vpop.permute.xlu0 %482
  %v485 = vadd.f32 %v471, %v483
  %v486 = vlaneseq
  %v487 = vshrl.u32 %v486, 7
  %v488 = vsub.s32 2, %v487
  %v489 = vrot.slane %v377, %v488
  %v490 = vmul.f32 %v22, %v489
  %v491 = vadd.f32 %v485, %v490
  %v492 = vlaneseq
  %v493 = vshrl.u32 %v492, 7
  %v494 = vsub.s32 3, %v493
  %v495 = vrot.slane %v377, %v494
  %v496 = vmul.f32 %v24, %v495
  %v497 = vadd.f32 %v491, %v496
  %v498 = vlaneseq
  %v499 = vshrl.u32 %v498, 7
  %v500 = vsub.s32 4, %v499
  %v501 = vrot.slane %v377, %v500
  %503 = vrot.lane.b32.xlu0 %v501, 1
  %v504 = vpop.permute.xlu0 %503
  %v506 = vmul.f32 %v22, %v504
  %508 = vrot.lane.b32.xlu0 %v506, 127
  %v509 = vpop.permute.xlu0 %508
  %v511 = vadd.f32 %v497, %v509
  %v512 = vlaneseq
  %v513 = vshrl.u32 %v512, 7
  %v514 = vsub.s32 5, %v513
  %v515 = vrot.slane %v377, %v514
  %517 = vrot.lane.b32.xlu0 %v515, 1
  %v518 = vpop.permute.xlu0 %517
  %v520 = vmul.f32 %v24, %v518
  %522 = vrot.lane.b32.xlu0 %v520, 127
  %v523 = vpop.permute.xlu0 %522
  %v525 = vadd.f32 %v511, %v523
  %v526 = vlaneseq
  %v527 = vshrl.u32 %v526, 7
  %v528 = vsub.s32 6, %v527
  %v529 = vrot.slane %v377, %v528
  %531 = vrot.lane.b32.xlu0 %v529, 2
  %v532 = vpop.permute.xlu0 %531
  %v534 = vmul.f32 %v22, %v532
  %536 = vrot.lane.b32.xlu0 %v534, 126
  %v537 = vpop.permute.xlu0 %536
  %v539 = vadd.f32 %v525, %v537
  %s540 = scalar_lea.vmem %s2, 2
  %v541 = vld [vmem:[%s540] sm:$0x1]
  %v543 = vlaneseq
  %v544 = vshrl.u32 %v543, 7
  %v545 = vsub.s32 0, %v544
  %v546 = vrot.slane %v541, %v545
  %v548 = vadd.f32 %v539, %v546
  %s549 = scalar_lea.vmem %s3, 4
  %550 = vst.msk [vmem:[%s549] sm:$0x3] %vm197, %v548
  %s551 = scalar_lea.vmem %s1, 48
  %v552 = vld [vmem:[%s551] sm:$0xff]
  %v553 = vld [vmem:[%s551 + $0x8] sm:$0x7f]
  %v554 = vlaneseq
  %v555 = vshrl.u32 %v554, 7
  %v556 = vsub.s32 0, %v555
  %v557 = vrot.slane %v552, %v556
  %v558 = vmul.f32 %v14, %v557
  %v559 = vadd.f32 %v558, 0.0
  %v560 = vlaneseq
  %v561 = vshrl.u32 %v560, 7
  %v562 = vsub.s32 1, %v561
  %v563 = vrot.slane %v552, %v562
  %v564 = vmul.f32 %v16, %v563
  %v565 = vadd.f32 %v559, %v564
  %v566 = vlaneseq
  %v567 = vshrl.u32 %v566, 7
  %v568 = vsub.s32 2, %v567
  %v569 = vrot.slane %v552, %v568
  %571 = vrot.lane.b32.xlu0 %v569, 1
  %v572 = vpop.permute.xlu0 %571
  %v574 = vmul.f32 %v14, %v572
  %576 = vrot.lane.b32.xlu0 %v574, 127
  %v577 = vpop.permute.xlu0 %576
  %v579 = vadd.f32 %v565, %v577
  %v580 = vlaneseq
  %v581 = vshrl.u32 %v580, 7
  %v582 = vsub.s32 3, %v581
  %v583 = vrot.slane %v552, %v582
  %585 = vrot.lane.b32.xlu0 %v583, 1
  %v586 = vpop.permute.xlu0 %585
  %v588 = vmul.f32 %v16, %v586
  %590 = vrot.lane.b32.xlu0 %v588, 127
  %v591 = vpop.permute.xlu0 %590
  %v593 = vadd.f32 %v579, %v591
  %v594 = vlaneseq
  %v595 = vshrl.u32 %v594, 7
  %v596 = vsub.s32 4, %v595
  %v597 = vrot.slane %v552, %v596
  %599 = vrot.lane.b32.xlu0 %v597, 2
  %v600 = vpop.permute.xlu0 %599
  %v602 = vmul.f32 %v14, %v600
  %604 = vrot.lane.b32.xlu0 %v602, 126
  %v605 = vpop.permute.xlu0 %604
  %v607 = vadd.f32 %v593, %v605
  %v608 = vlaneseq
  %v609 = vshrl.u32 %v608, 7
  %v610 = vsub.s32 5, %v609
  %v611 = vrot.slane %v552, %v610
  %v612 = vmul.f32 %v18, %v611
  %v613 = vadd.f32 %v607, %v612
  %v614 = vlaneseq
  %v615 = vshrl.u32 %v614, 7
  %v616 = vsub.s32 6, %v615
  %v617 = vrot.slane %v552, %v616
  %v618 = vmul.f32 %v20, %v617
  %v619 = vadd.f32 %v613, %v618
  %v620 = vlaneseq
  %v621 = vshrl.u32 %v620, 7
  %v622 = vsub.s32 7, %v621
  %v623 = vrot.slane %v552, %v622
  %625 = vrot.lane.b32.xlu0 %v623, 1
  %v626 = vpop.permute.xlu0 %625
  %v628 = vmul.f32 %v18, %v626
  %630 = vrot.lane.b32.xlu0 %v628, 127
  %v631 = vpop.permute.xlu0 %630
  %v633 = vadd.f32 %v619, %v631
  %v634 = vlaneseq
  %v635 = vshrl.u32 %v634, 7
  %v636 = vsub.s32 0, %v635
  %v637 = vrot.slane %v553, %v636
  %639 = vrot.lane.b32.xlu0 %v637, 1
  %v640 = vpop.permute.xlu0 %639
  %v642 = vmul.f32 %v20, %v640
  %644 = vrot.lane.b32.xlu0 %v642, 127
  %v645 = vpop.permute.xlu0 %644
  %v647 = vadd.f32 %v633, %v645
  %v648 = vlaneseq
  %v649 = vshrl.u32 %v648, 7
  %v650 = vsub.s32 1, %v649
  %v651 = vrot.slane %v553, %v650
  %653 = vrot.lane.b32.xlu0 %v651, 2
  %v654 = vpop.permute.xlu0 %653
  %v656 = vmul.f32 %v18, %v654
  %658 = vrot.lane.b32.xlu0 %v656, 126
  %v659 = vpop.permute.xlu0 %658
  %v661 = vadd.f32 %v647, %v659
  %v662 = vlaneseq
  %v663 = vshrl.u32 %v662, 7
  %v664 = vsub.s32 2, %v663
  %v665 = vrot.slane %v553, %v664
  %v666 = vmul.f32 %v22, %v665
  %v667 = vadd.f32 %v661, %v666
  %v668 = vlaneseq
  %v669 = vshrl.u32 %v668, 7
  %v670 = vsub.s32 3, %v669
  %v671 = vrot.slane %v553, %v670
  %v672 = vmul.f32 %v24, %v671
  %v673 = vadd.f32 %v667, %v672
  %v674 = vlaneseq
  %v675 = vshrl.u32 %v674, 7
  %v676 = vsub.s32 4, %v675
  %v677 = vrot.slane %v553, %v676
  %679 = vrot.lane.b32.xlu0 %v677, 1
  %v680 = vpop.permute.xlu0 %679
  %v682 = vmul.f32 %v22, %v680
  %684 = vrot.lane.b32.xlu0 %v682, 127
  %v685 = vpop.permute.xlu0 %684
  %v687 = vadd.f32 %v673, %v685
  %v688 = vlaneseq
  %v689 = vshrl.u32 %v688, 7
  %v690 = vsub.s32 5, %v689
  %v691 = vrot.slane %v553, %v690
  %693 = vrot.lane.b32.xlu0 %v691, 1
  %v694 = vpop.permute.xlu0 %693
  %v696 = vmul.f32 %v24, %v694
  %698 = vrot.lane.b32.xlu0 %v696, 127
  %v699 = vpop.permute.xlu0 %698
  %v701 = vadd.f32 %v687, %v699
  %v702 = vlaneseq
  %v703 = vshrl.u32 %v702, 7
  %v704 = vsub.s32 6, %v703
  %v705 = vrot.slane %v553, %v704
  %707 = vrot.lane.b32.xlu0 %v705, 2
  %v708 = vpop.permute.xlu0 %707
  %v710 = vmul.f32 %v22, %v708
  %712 = vrot.lane.b32.xlu0 %v710, 126
  %v713 = vpop.permute.xlu0 %712
  %v715 = vadd.f32 %v701, %v713
  %s716 = scalar_lea.vmem %s2, 3
  %v717 = vld [vmem:[%s716] sm:$0x1]
  %v719 = vlaneseq
  %v720 = vshrl.u32 %v719, 7
  %v721 = vsub.s32 0, %v720
  %v722 = vrot.slane %v717, %v721
  %v724 = vadd.f32 %v715, %v722
  %s725 = scalar_lea.vmem %s3, 6
  %726 = vst.msk [vmem:[%s725] sm:$0x3] %vm197, %v724
  // Predicated region
  $region14: #{local_linear_forward.1} parent=0 // pred_check
    _
  $region15: #{local_linear_forward.1} parent=0 // pred_check_branch
    %728 = sbr.rel (0) target = $region17
  $region16: #{local_linear_forward.1} parent=0 // pred_region
    _
  $region17: #{local_linear_forward.1} parent=0 // pred_fallthru
    _
  // Predicated region
  $region18: #{local_linear_forward.1} parent=0 // pred_check
    _
  $region19: #{local_linear_forward.1} parent=0 // pred_check_branch
    %730 = sbr.rel (0) target = $region21
  $region20: #{local_linear_forward.1} parent=0 // pred_region
    _
  $region21: #{local_linear_forward.1} parent=0 // pred_fallthru
    _

</llo_original>
